<compile_context>
chip_gen: v7x
topology: tpu7x:2x2x1
jax: 0.10.0
libtpu: 0.0.40
codegen_flags: <defaults>
</compile_context>

<pallas_src>
import numpy as np
import jax
import jax.numpy as jnp
from jax.experimental import pallas as pl
from jax.experimental.pallas import tpu as pltpu


def _round_up(n, m):
    return ((n + m - 1) // m) * m


def _build_operators(H, W, dtype):
    """Dense 2-D rfftn / irfftn operators acting on flattened (H*W) images.

    Returns:
      F2: (H*W, 2*HWFp)  column-stacked [Re | Im] forward operator (zero-padded).
      G2: (2*HWFp, H*W)  row-stacked [Re ; Im] inverse operator (1/(H*W) folded in).
      HWFp: padded half-spectrum length (multiple of 128).
    """
    WF = W // 2 + 1
    HW = H * W
    HWF = H * WF
    HWFp = max(128, _round_up(HWF, 128))

    n_h = (np.arange(HW) // W)[:, None]        # (HW, 1)  spatial row index
    n_w = (np.arange(HW) % W)[:, None]         # (HW, 1)  spatial col index
    k_h = (np.arange(HWF) // WF)[None, :]      # (1, HWF) frequency along H
    k_w = (np.arange(HWF) % WF)[None, :]       # (1, HWF) frequency along W
    theta = 2.0 * np.pi * (k_h * n_h / H + k_w * n_w / W)   # (HW, HWF)

    # Forward rfftn: S = x_flat @ (Fr + i*Fi)   (norm='backward' -> unscaled).
    fr = np.cos(theta)
    fi = -np.sin(theta)

    # Inverse irfftn: out = Zr @ Gr + Zi @ Gi, with Hermitian doubling
    # c_kw = 1 for k_w == 0 and k_w == W/2 (W even), else 2, and 1/(H*W).
    c = np.where((k_w == 0) | ((W % 2 == 0) & (k_w == W // 2)), 1.0, 2.0)
    gr = (c * np.cos(theta) / (H * W)).T        # (HWF, HW)
    gi = (-c * np.sin(theta) / (H * W)).T       # (HWF, HW)

    F2 = np.zeros((HW, 2 * HWFp), dtype=np.float32)
    F2[:, :HWF] = fr
    F2[:, HWFp:HWFp + HWF] = fi
    G2 = np.zeros((2 * HWFp, HW), dtype=np.float32)
    G2[:HWF, :] = gr
    G2[HWFp:HWFp + HWF, :] = gi
    return jnp.asarray(F2, dtype=dtype), jnp.asarray(G2, dtype=dtype), HWFp


def _rfft_block_kernel(x_ref, wr_ref, wi_ref, f2_ref, g2_ref, o_ref):
    hwfp = wr_ref.shape[-1]
    x2d = x_ref[0]                                  # (C, H*W), compute dtype (bf16)

    # rfftn as ONE lane-dense MXU matmul: [Sr | Si] = x @ F2 (f32 accumulation).
    spec = jnp.dot(x2d, f2_ref[...], preferred_element_type=jnp.float32)  # (C, 2*HWFp)
    sr = spec[:, :hwfp]                             # lane-aligned split (HWFp % 128 == 0)
    si = spec[:, hwfp:]

    # Wrapped module: per-channel complex spectral filter (elementwise, f32 on VPU).
    wr = wr_ref[...]
    wi = wi_ref[...]
    zr = sr * wr - si * wi
    zi = sr * wi + si * wr

    # irfftn as ONE lane-dense MXU matmul: out = [Zr | Zi] @ G2.
    z = jnp.concatenate([zr, zi], axis=-1).astype(g2_ref.dtype)           # (C, 2*HWFp)
    out = jnp.dot(z, g2_ref[...], preferred_element_type=jnp.float32)     # (C, H*W)
    o_ref[0] = out.astype(o_ref.dtype)


def rfft_block_forward(x, w_real, w_imag, *, compute_dtype=jnp.bfloat16):
    """RFFTBlock forward. x: (B, C, H, W) f32; w_real/w_imag: (C, H, W//2+1) f32."""
    B, C, H, W = x.shape
    WF = W // 2 + 1
    HW = H * W
    HWF = H * WF
    F2, G2, HWFp = _build_operators(H, W, compute_dtype)

    # Lane-dense slabs: flatten spatial dims; filter weights flattened + zero-padded.
    x2 = x.reshape(B, C, HW).astype(compute_dtype)
    pad = HWFp - HWF
    wr = jnp.pad(w_real.astype(jnp.float32).reshape(C, HWF), ((0, 0), (0, pad)))
    wi = jnp.pad(w_imag.astype(jnp.float32).reshape(C, HWF), ((0, 0), (0, pad)))

    out2 = pl.pallas_call(
        _rfft_block_kernel,
        out_shape=jax.ShapeDtypeStruct((B, C, HW), x.dtype),
        grid_spec=pltpu.PrefetchScalarGridSpec(
            num_scalar_prefetch=0,
            grid=(B,),
            in_specs=[
                pl.BlockSpec((1, C, HW), lambda b: (b, 0, 0)),     # x slab (all channels)
                pl.BlockSpec((C, HWFp), lambda b: (0, 0)),         # filter real (resident)
                pl.BlockSpec((C, HWFp), lambda b: (0, 0)),         # filter imag (resident)
                pl.BlockSpec((HW, 2 * HWFp), lambda b: (0, 0)),    # forward DFT operator
                pl.BlockSpec((2 * HWFp, HW), lambda b: (0, 0)),    # inverse DFT operator
            ],
            out_specs=pl.BlockSpec((1, C, HW), lambda b: (b, 0, 0)),
        ),
        compiler_params=pltpu.CompilerParams(
            dimension_semantics=("parallel",),
        ),
    )(x2, wr, wi, F2, G2)
    return out2.reshape(B, C, H, W)


if __name__ == "__main__":
    B, C, H, W = 2, 4, 16, 16
    WF = W // 2 + 1

    key = jax.random.PRNGKey(0)
    kx, kr, ki = jax.random.split(key, 3)
    x = jax.random.normal(kx, (B, C, H, W), dtype=jnp.float32)
    # deterministic "module" parameters: per-channel complex spectral filter
    w_real = 0.1 * jax.random.normal(kr, (C, H, WF), dtype=jnp.float32)
    w_imag = 0.1 * jax.random.normal(ki, (C, H, WF), dtype=jnp.float32)

    out = jax.block_until_ready(rfft_block_forward(x, w_real, w_imag))

    # Reference (numpy FFT — same semantics as torch.fft rfftn/irfftn, norm='backward').
    x_np = np.asarray(x, dtype=np.float64)
    w_np = np.asarray(w_real, dtype=np.float64) + 1j * np.asarray(w_imag, dtype=np.float64)
    spec = np.fft.rfftn(x_np, s=(H, W), axes=(-2, -1), norm="backward")
    spec = spec * w_np[None]
    ref = np.fft.irfftn(spec, axes=(-2, -1), norm="backward")

    out_np = np.asarray(out, dtype=np.float64)
    scale = np.max(np.abs(ref)) + 1e-6
    max_err = np.max(np.abs(out_np - ref))
    assert out.shape == (B, C, H, W) and out.dtype == jnp.float32
    assert max_err < 2e-2 * scale, f"max abs err {max_err} (scale {scale})"
    print("KERNEL_OK")
</pallas_src>

<mosaic_0001>
module attributes {stable_mosaic.version = 11 : i64} {
  func.func @_rfft_block_kernel(%arg0: i32, %arg1: memref<1x4x256xbf16, #tpu.memory_space<vmem>>, %arg2: memref<4x256xf32, #tpu.memory_space<vmem>>, %arg3: memref<4x256xf32, #tpu.memory_space<vmem>>, %arg4: memref<256x512xbf16, #tpu.memory_space<vmem>>, %arg5: memref<512x256xbf16, #tpu.memory_space<vmem>>, %arg6: memref<1x4x256xf32, #tpu.memory_space<vmem>>) attributes {dimension_semantics = [#tpu.dimension_semantics<parallel>], iteration_bounds = array<i64: 2>, scalar_prefetch = 0 : i64, scratch_operands = 0 : i64, tpu.core_type = #tpu.core_type<tc>, window_params = [{transform_indices = @transform_0, window_bounds = array<i64: 1, 4, 256>}, {pipeline_mode = #tpu.pipeline_mode<synchronous>, transform_indices = @transform_1, window_bounds = array<i64: 4, 256>}, {pipeline_mode = #tpu.pipeline_mode<synchronous>, transform_indices = @transform_2, window_bounds = array<i64: 4, 256>}, {pipeline_mode = #tpu.pipeline_mode<synchronous>, transform_indices = @transform_3, window_bounds = array<i64: 256, 512>}, {pipeline_mode = #tpu.pipeline_mode<synchronous>, transform_indices = @transform_4, window_bounds = array<i64: 512, 256>}, {transform_indices = @transform_5, window_bounds = array<i64: 1, 4, 256>}]} {
    %c0 = arith.constant 0 : index
    %c0_0 = arith.constant 0 : index
    %c0_1 = arith.constant 0 : index
    %0 = vector.load %arg1[%c0, %c0_0, %c0_1] : memref<1x4x256xbf16, #tpu.memory_space<vmem>>, vector<1x4x256xbf16>
    %1 = vector.shape_cast %0 : vector<1x4x256xbf16> to vector<4x256xbf16>
    %c0_2 = arith.constant 0 : index
    %c0_3 = arith.constant 0 : index
    %2 = vector.load %arg4[%c0_2, %c0_3] : memref<256x512xbf16, #tpu.memory_space<vmem>>, vector<256x512xbf16>
    %cst = arith.constant dense<0.000000e+00> : vector<4x512xf32>
    %3 = tpu.matmul %1, %2, %cst {dimension_numbers = #tpu.dot_dimension_numbers<[1], [0], [0], [1], [0, 0, 1, 1], [], []>} : vector<4x256xbf16>, vector<256x512xbf16>, vector<4x512xf32> -> vector<4x512xf32>
    %4 = vector.extract_strided_slice %3 {offsets = [0, 0], sizes = [4, 256], strides = [1, 1]} : vector<4x512xf32> to vector<4x256xf32>
    %5 = vector.extract_strided_slice %3 {offsets = [0, 256], sizes = [4, 256], strides = [1, 1]} : vector<4x512xf32> to vector<4x256xf32>
    %c0_4 = arith.constant 0 : index
    %c0_5 = arith.constant 0 : index
    %6 = vector.load %arg2[%c0_4, %c0_5] : memref<4x256xf32, #tpu.memory_space<vmem>>, vector<4x256xf32>
    %c0_6 = arith.constant 0 : index
    %c0_7 = arith.constant 0 : index
    %7 = vector.load %arg3[%c0_6, %c0_7] : memref<4x256xf32, #tpu.memory_space<vmem>>, vector<4x256xf32>
    %8 = arith.mulf %4, %6 : vector<4x256xf32>
    %9 = arith.mulf %5, %7 : vector<4x256xf32>
    %10 = arith.subf %8, %9 : vector<4x256xf32>
    %11 = arith.mulf %4, %7 : vector<4x256xf32>
    %12 = arith.mulf %5, %6 : vector<4x256xf32>
    %13 = arith.addf %11, %12 : vector<4x256xf32>
    %14 = tpu.concatenate %10, %13 in 1 : vector<4x256xf32>, vector<4x256xf32> -> vector<4x512xf32>
    %15 = arith.truncf %14 : vector<4x512xf32> to vector<4x512xbf16>
    %c0_8 = arith.constant 0 : index
    %c0_9 = arith.constant 0 : index
    %16 = vector.load %arg5[%c0_8, %c0_9] : memref<512x256xbf16, #tpu.memory_space<vmem>>, vector<512x256xbf16>
    %cst_10 = arith.constant dense<0.000000e+00> : vector<4x256xf32>
    %17 = tpu.matmul %15, %16, %cst_10 {dimension_numbers = #tpu.dot_dimension_numbers<[1], [0], [0], [1], [0, 0, 1, 1], [], []>} : vector<4x512xbf16>, vector<512x256xbf16>, vector<4x256xf32> -> vector<4x256xf32>
    %c0_11 = arith.constant 0 : index
    %c0_12 = arith.constant 0 : index
    %c0_13 = arith.constant 0 : index
    %18 = vector.load %arg6[%c0_11, %c0_12, %c0_13] : memref<1x4x256xf32, #tpu.memory_space<vmem>>, vector<1x4x256xf32>
    %19 = vector.shape_cast %18 : vector<1x4x256xf32> to vector<4x256xf32>
    %20 = vector.shape_cast %17 : vector<4x256xf32> to vector<1x4x256xf32>
    tpu.vector_store %arg6[%c0_11, %c0_12, %c0_13], %20 {strides = array<i32>} : memref<1x4x256xf32, #tpu.memory_space<vmem>>, vector<1x4x256xf32>,
    return
  }
  func.func @transform_0(%arg0: i32) -> (i32, i32, i32) {
    %c0_i32 = arith.constant 0 : i32
    %c0_i32_0 = arith.constant 0 : i32
    %c0_i32_1 = arith.constant 0 : i32
    return %arg0, %c0_i32, %c0_i32_0 : i32, i32, i32
  }
  func.func @transform_1(%arg0: i32) -> (i32, i32) {
    %c0_i32 = arith.constant 0 : i32
    %c0_i32_0 = arith.constant 0 : i32
    %c0_i32_1 = arith.constant 0 : i32
    return %c0_i32, %c0_i32_0 : i32, i32
  }
  func.func @transform_2(%arg0: i32) -> (i32, i32) {
    %c0_i32 = arith.constant 0 : i32
    %c0_i32_0 = arith.constant 0 : i32
    %c0_i32_1 = arith.constant 0 : i32
    return %c0_i32, %c0_i32_0 : i32, i32
  }
  func.func @transform_3(%arg0: i32) -> (i32, i32) {
    %c0_i32 = arith.constant 0 : i32
    %c0_i32_0 = arith.constant 0 : i32
    %c0_i32_1 = arith.constant 0 : i32
    return %c0_i32, %c0_i32_0 : i32, i32
  }
  func.func @transform_4(%arg0: i32) -> (i32, i32) {
    %c0_i32 = arith.constant 0 : i32
    %c0_i32_0 = arith.constant 0 : i32
    %c0_i32_1 = arith.constant 0 : i32
    return %c0_i32, %c0_i32_0 : i32, i32
  }
  func.func @transform_5(%arg0: i32) -> (i32, i32, i32) {
    %c0_i32 = arith.constant 0 : i32
    %c0_i32_0 = arith.constant 0 : i32
    %c0_i32_1 = arith.constant 0 : i32
    return %arg0, %c0_i32, %c0_i32_0 : i32, i32, i32
  }
}

</mosaic_0001>

<llo_original>
// kernel: tpu_custom_call.1
$region0: #{tpu_custom_call.1}
  #allocation0 [shape = 'u32[]', space=smem, size = 0x4, offset = 0x4, fixed_abs, tag = 'smem constant byte address 0x4 - core index']
  #allocation1 [shape = 'u32[144,128]{1,0:T(1,128)}', space=vmem, size = 0x12000, scoped, tag = 'internal scratch']
  %s0 = inlined_call_operand.hbm [shape: bf16[2,4,256], index: 0, kind: input, shape index: {}]
  %s1 = inlined_call_operand.hbm [shape: f32[4,256], index: 1, kind: input, shape index: {}]
  %s2 = inlined_call_operand.hbm [shape: f32[4,256], index: 2, kind: input, shape index: {}]
  %s3 = inlined_call_operand.hbm [shape: bf16[256,512], index: 3, kind: input, shape index: {}]
  %s4 = inlined_call_operand.hbm [shape: bf16[512,256], index: 4, kind: input, shape index: {}]
  %s5 = inlined_call_operand.hbm [shape: f32[2,4,256], index: 5, kind: output, shape index: {}]
  %s6 = sld [smem:[#allocation0]]
  $region73: #{tpu_custom_call.1} parent=0
    _
  %s8 = ssub.s32 1, %s6
  %s9 = scalar_select 0, %s8, %s6
  $region1: #{tpu_custom_call.1} parent=0
    #allocation2 [shape = 'u8[4096]{0}', space=vmem, size = 0x1000, scoped, tag = 'input window, operand 0']
    #allocation3 [shape = 's32[2]{0}', space=sflag, size = 0x8, scoped, tag = 'scoped memory for tpu_custom_call.1']
    #allocation4 [shape = 's32[2]{0}', space=sflag, size = 0x8, scoped, tag = 'scoped memory for tpu_custom_call.1']
    #allocation5 [shape = 'u8[4096]{0}', space=vmem, size = 0x1000, scoped, tag = 'input window, operand 1, single buffered']
    #allocation6 [shape = 's32[1]{0}', space=sflag, size = 0x4, scoped, tag = 'scoped memory for tpu_custom_call.1']
    #allocation7 [shape = 'u8[4096]{0}', space=vmem, size = 0x1000, scoped, tag = 'input window, operand 2, single buffered']
    #allocation8 [shape = 'u8[262144]{0}', space=vmem, size = 0x40000, scoped, tag = 'input window, operand 3, single buffered']
    #allocation9 [shape = 's32[1]{0}', space=sflag, size = 0x4, scoped, tag = 'scoped memory for tpu_custom_call.1']
    #allocation10 [shape = 'u8[262144]{0}', space=vmem, size = 0x40000, scoped, tag = 'input window, operand 4, single buffered']
    #allocation11 [shape = 'u8[8192]{0}', space=vmem, size = 0x2000, scoped, tag = 'output window, operand 0']
    %10 = vsyncpa [#allocation3], 0
    %s11 = scalar_lea.sflag [#allocation3], 1
    %12 = vsyncpa %s11, 0
    %13 = vsyncpa [#allocation6], 0
    %14 = vsyncpa [#allocation9], 0
    %15 = vsyncpa [#allocation4], 0
    %s16 = scalar_lea.sflag [#allocation4], 1
    %17 = vsyncpa %s16, 0
    loop: start=0, step=1, limit=4
    $region2: #{tpu_custom_call.1} parent=1 // loop_pre_header
      _
    $region3: #{tpu_custom_call.1} parent=1 // loop_header
      %s19 = sphi 0, %s23
      %p20 = scmp.ge.s32.totalorder %s19, 4
      %s29 = sphi 0, %s31
      %s32 = sphi 0, %s29
      %s33 = sphi 0, %s32
      %s49 = sphi 0, %s33
      %s53 = sphi 0, %s53
      %s55 = sphi 0, %s53
      %s56 = sphi 0, %s55
      %s70 = sphi 0, %s56
      %s74 = sphi 0, %s74
      %s76 = sphi 0, %s74
      %s77 = sphi 0, %s76
      %s91 = sphi 0, %s77
      %s95 = sphi 0, %s95
      %s97 = sphi 0, %s95
      %s98 = sphi 0, %s97
      %s112 = sphi 0, %s98
      %s116 = sphi 0, %s116
      %s118 = sphi 0, %s116
      %s119 = sphi 0, %s118
      %s133 = sphi 0, %s119
      %s139 = sphi 0, %s141
      %s142 = sphi 0, %s139
      %s143 = sphi 0, %s142
      %s159 = sphi 0, %s143
    $region4: #{tpu_custom_call.1} parent=1 // loop_header_branch
      %22 = sbr.rel (%p20) target = $region8
    $region5: #{tpu_custom_call.1} parent=1 // loop_body
      %s24 = ssub.s32 %s19, 1
      %s25 = ssub.s32 %s19, 2
      %s26 = sadd.s32 %s19, 1
      %s27 = ssub.s32 %s19, %s26
      %p28 = scmp.eq.s32.totalorder %s27, 0
      %s30 = sadd.s32 %s29, 1
      %s31 = scalar_select %p28, %s29, %s30
      %p34 = pneg %p28
      %p35 = scmp.eq.s32.totalorder %s19, 1
      %p36 = por %p34, %p35
      %p37 = scmp.ne.s32.totalorder %s29, %s32
      %p38 = scmp.eq.s32.totalorder %s19, 0
      %p39 = por %p37, %p38
      %p40 = scmp.ne.s32.totalorder %s29, %s32
      %p41 = scmp.eq.s32.totalorder %s24, 1
      %p42 = por %p40, %p41
      %p43 = scmp.ne.s32.totalorder %s32, %s33
      %p44 = scmp.eq.s32.totalorder %s24, 0
      %p45 = por %p43, %p44
      %p46 = scmp.ne.s32.totalorder %s32, %s33
      %p47 = scmp.eq.s32.totalorder %s25, 1
      %p48 = por %p46, %p47
      %p50 = scmp.ne.s32.totalorder %s33, %s49
      %p51 = scmp.eq.s32.totalorder %s25, 0
      %p52 = por %p50, %p51
      %s54 = sadd.s32 %s53, 1
      %p57 = scmp.eq.s32.totalorder %s19, 1
      %p58 = scmp.ne.s32.totalorder %s53, %s55
      %p59 = scmp.eq.s32.totalorder %s19, 0
      %p60 = por %p58, %p59
      %p61 = scmp.ne.s32.totalorder %s53, %s55
      %p62 = scmp.eq.s32.totalorder %s24, 1
      %p63 = por %p61, %p62
      %p64 = scmp.ne.s32.totalorder %s55, %s56
      %p65 = scmp.eq.s32.totalorder %s24, 0
      %p66 = por %p64, %p65
      %p67 = scmp.ne.s32.totalorder %s55, %s56
      %p68 = scmp.eq.s32.totalorder %s25, 1
      %p69 = por %p67, %p68
      %p71 = scmp.ne.s32.totalorder %s56, %s70
      %p72 = scmp.eq.s32.totalorder %s25, 0
      %p73 = por %p71, %p72
      %s75 = sadd.s32 %s74, 1
      %p78 = scmp.eq.s32.totalorder %s19, 1
      %p79 = scmp.ne.s32.totalorder %s74, %s76
      %p80 = scmp.eq.s32.totalorder %s19, 0
      %p81 = por %p79, %p80
      %p82 = scmp.ne.s32.totalorder %s74, %s76
      %p83 = scmp.eq.s32.totalorder %s24, 1
      %p84 = por %p82, %p83
      %p85 = scmp.ne.s32.totalorder %s76, %s77
      %p86 = scmp.eq.s32.totalorder %s24, 0
      %p87 = por %p85, %p86
      %p88 = scmp.ne.s32.totalorder %s76, %s77
      %p89 = scmp.eq.s32.totalorder %s25, 1
      %p90 = por %p88, %p89
      %p92 = scmp.ne.s32.totalorder %s77, %s91
      %p93 = scmp.eq.s32.totalorder %s25, 0
      %p94 = por %p92, %p93
      %s96 = sadd.s32 %s95, 1
      %p99 = scmp.eq.s32.totalorder %s19, 1
      %p100 = scmp.ne.s32.totalorder %s95, %s97
      %p101 = scmp.eq.s32.totalorder %s19, 0
      %p102 = por %p100, %p101
      %p103 = scmp.ne.s32.totalorder %s95, %s97
      %p104 = scmp.eq.s32.totalorder %s24, 1
      %p105 = por %p103, %p104
      %p106 = scmp.ne.s32.totalorder %s97, %s98
      %p107 = scmp.eq.s32.totalorder %s24, 0
      %p108 = por %p106, %p107
      %p109 = scmp.ne.s32.totalorder %s97, %s98
      %p110 = scmp.eq.s32.totalorder %s25, 1
      %p111 = por %p109, %p110
      %p113 = scmp.ne.s32.totalorder %s98, %s112
      %p114 = scmp.eq.s32.totalorder %s25, 0
      %p115 = por %p113, %p114
      %s117 = sadd.s32 %s116, 1
      %p120 = scmp.eq.s32.totalorder %s19, 1
      %p121 = scmp.ne.s32.totalorder %s116, %s118
      %p122 = scmp.eq.s32.totalorder %s19, 0
      %p123 = por %p121, %p122
      %p124 = scmp.ne.s32.totalorder %s116, %s118
      %p125 = scmp.eq.s32.totalorder %s24, 1
      %p126 = por %p124, %p125
      %p127 = scmp.ne.s32.totalorder %s118, %s119
      %p128 = scmp.eq.s32.totalorder %s24, 0
      %p129 = por %p127, %p128
      %p130 = scmp.ne.s32.totalorder %s118, %s119
      %p131 = scmp.eq.s32.totalorder %s25, 1
      %p132 = por %p130, %p131
      %p134 = scmp.ne.s32.totalorder %s119, %s133
      %p135 = scmp.eq.s32.totalorder %s25, 0
      %p136 = por %p134, %p135
      %s137 = ssub.s32 %s19, %s26
      %p138 = scmp.eq.s32.totalorder %s137, 0
      %s140 = sadd.s32 %s139, 1
      %s141 = scalar_select %p138, %s139, %s140
      %p144 = pneg %p138
      %p145 = scmp.eq.s32.totalorder %s19, 1
      %p146 = por %p144, %p145
      %p147 = scmp.ne.s32.totalorder %s139, %s142
      %p148 = scmp.eq.s32.totalorder %s19, 0
      %p149 = por %p147, %p148
      %p150 = scmp.ne.s32.totalorder %s139, %s142
      %p151 = scmp.eq.s32.totalorder %s24, 1
      %p152 = por %p150, %p151
      %p153 = scmp.ne.s32.totalorder %s142, %s143
      %p154 = scmp.eq.s32.totalorder %s24, 0
      %p155 = por %p153, %p154
      %p156 = scmp.ne.s32.totalorder %s142, %s143
      %p157 = scmp.eq.s32.totalorder %s25, 1
      %p158 = por %p156, %p157
      %p160 = scmp.ne.s32.totalorder %s143, %s159
      %p161 = scmp.eq.s32.totalorder %s25, 0
      %p162 = por %p160, %p161
      %p163 = scmp.le.s32.totalorder 1, %s19
      %p164 = scmp.lt.s32.totalorder %s19, 3
      %p165 = pnand %p163, %p164
      %p166 = pneg %p165
      // Predicated region
      $region9: #{tpu_custom_call.1} parent=5 // pred_check
        _
      $region10: #{tpu_custom_call.1} parent=5 // pred_check_branch
        %168 = sbr.rel (%p165) target = $region12
      $region11: #{tpu_custom_call.1} parent=5 // pred_region
        %s169 = ssub.s32 %s19, 1
        // Predicated region
        $region13: #{tpu_custom_call.1} parent=11 // pred_check
          %p170 = pneg %p66
        $region14: #{tpu_custom_call.1} parent=11 // pred_check_branch
          %172 = sbr.rel (%p170) target = $region16
        $region15: #{tpu_custom_call.1} parent=11 // pred_region
          %s174 = ssub.s32 128, 128
          %175 = vsyncadd [#allocation6], %s174
          %s177 = sshll.u32 [#allocation5], 4
          %s178 = int_to_ptr.vmem [resolvable:$true] %s177
          %180 = dma.hbm_to_vmem [thread:$0]  %s1, 128, %s178, [#allocation6]
        $region16: #{tpu_custom_call.1} parent=11 // pred_fallthru
          _
        // Predicated region
        $region17: #{tpu_custom_call.1} parent=11 // pred_check
          %p181 = pneg %p87
        $region18: #{tpu_custom_call.1} parent=11 // pred_check_branch
          %183 = sbr.rel (%p181) target = $region20
        $region19: #{tpu_custom_call.1} parent=11 // pred_region
          %s185 = ssub.s32 128, 128
          %186 = vsyncadd [#allocation6], %s185
          %s188 = sshll.u32 [#allocation7], 4
          %s189 = int_to_ptr.vmem [resolvable:$true] %s188
          %191 = dma.hbm_to_vmem [thread:$0]  %s2, 128, %s189, [#allocation6]
        $region20: #{tpu_custom_call.1} parent=11 // pred_fallthru
          _
        // Predicated region
        $region21: #{tpu_custom_call.1} parent=11 // pred_check
          %p192 = pneg %p108
        $region22: #{tpu_custom_call.1} parent=11 // pred_check_branch
          %194 = sbr.rel (%p192) target = $region24
        $region23: #{tpu_custom_call.1} parent=11 // pred_region
          %s196 = ssub.s32 8192, 8192
          %197 = vsyncadd [#allocation9], %s196
          %s198 = sshll.u32 [#allocation8], 4
          %s199 = int_to_ptr.vmem [resolvable:$true] %s198
          %204 = dma.hbm_to_vmem [thread:$0]  %s3, 8192, %s199, [#allocation9], 256, 256, 16
        $region24: #{tpu_custom_call.1} parent=11 // pred_fallthru
          _
        // Predicated region
        $region25: #{tpu_custom_call.1} parent=11 // pred_check
          %p205 = pneg %p129
        $region26: #{tpu_custom_call.1} parent=11 // pred_check_branch
          %207 = sbr.rel (%p205) target = $region28
        $region27: #{tpu_custom_call.1} parent=11 // pred_region
          %s209 = ssub.s32 8192, 8192
          %210 = vsyncadd [#allocation9], %s209
          %s211 = sshll.u32 [#allocation10], 4
          %s212 = int_to_ptr.vmem [resolvable:$true] %s211
          %217 = dma.hbm_to_vmem [thread:$0]  %s4, 8192, %s212, [#allocation9], 128, 128, 8
        $region28: #{tpu_custom_call.1} parent=11 // pred_fallthru
          _
      $region12: #{tpu_custom_call.1} parent=5 // pred_fallthru
        _
      %p218 = scmp.lt.s32.totalorder %s19, 2
      // Predicated region
      $region29: #{tpu_custom_call.1} parent=5 // pred_check
        %p219 = pneg %p218
      $region30: #{tpu_custom_call.1} parent=5 // pred_check_branch
        %221 = sbr.rel (%p219) target = $region32
      $region31: #{tpu_custom_call.1} parent=5 // pred_region
        // Predicated region
        $region33: #{tpu_custom_call.1} parent=31 // pred_check
          %p222 = pneg %p39
        $region34: #{tpu_custom_call.1} parent=31 // pred_check_branch
          %224 = sbr.rel (%p222) target = $region36
        $region35: #{tpu_custom_call.1} parent=31 // pred_region
          %s225 = sand.u32 %s29, 1
          %s226 = scalar_lea.sflag [#allocation3], %s225
          %s227 = sand.u32 %s29, 1
          %s228 = smul.addr %s227, 4
          %s229 = scalar_lea.vmem [#allocation2], %s228
          %s231 = ssub.s32 64, 64
          %232 = vsyncadd %s226, %s231
          %s233 = smul.addr %s19, 2
          %s234 = smul.addr %s233, 32
          %s235 = scalar_lea.hbm %s0, %s234
          %s237 = sshll.u32 %s229, 4
          %s238 = int_to_ptr.vmem [resolvable:$true] %s237
          %240 = dma.hbm_to_vmem [thread:$0]  %s235, 64, %s238, %s226
        $region36: #{tpu_custom_call.1} parent=31 // pred_fallthru
          _
      $region32: #{tpu_custom_call.1} parent=5 // pred_fallthru
        _
      %p241 = scmp.le.s32.totalorder 1, %s19
      %p242 = scmp.lt.s32.totalorder %s19, 3
      %p243 = pnand %p241, %p242
      %p244 = pneg %p243
      // Predicated region
      $region37: #{tpu_custom_call.1} parent=5 // pred_check
        _
      $region38: #{tpu_custom_call.1} parent=5 // pred_check_branch
        %246 = sbr.rel (%p243) target = $region40
      $region39: #{tpu_custom_call.1} parent=5 // pred_region
        %s247 = ssub.s32 %s19, 1
        %s248 = sand.u32 %s32, 1
        %s249 = scalar_lea.sflag [#allocation3], %s248
        %s250 = sand.u32 %s32, 1
        %s251 = smul.addr %s250, 4
        %s252 = scalar_lea.vmem [#allocation2], %s251
        // Predicated region
        $region41: #{tpu_custom_call.1} parent=39 // pred_check
          %p253 = pneg %p45
        $region42: #{tpu_custom_call.1} parent=39 // pred_check_branch
          %255 = sbr.rel (%p253) target = $region44
        $region43: #{tpu_custom_call.1} parent=39 // pred_region
          %256 = dma.done %s249, 64
        $region44: #{tpu_custom_call.1} parent=39 // pred_fallthru
          _
        // Predicated region
        $region45: #{tpu_custom_call.1} parent=39 // pred_check
          %p257 = pneg %p66
        $region46: #{tpu_custom_call.1} parent=39 // pred_check_branch
          %259 = sbr.rel (%p257) target = $region48
        $region47: #{tpu_custom_call.1} parent=39 // pred_region
          %260 = dma.done [#allocation6], 128
        $region48: #{tpu_custom_call.1} parent=39 // pred_fallthru
          _
        // Predicated region
        $region49: #{tpu_custom_call.1} parent=39 // pred_check
          %p261 = pneg %p87
        $region50: #{tpu_custom_call.1} parent=39 // pred_check_branch
          %263 = sbr.rel (%p261) target = $region52
        $region51: #{tpu_custom_call.1} parent=39 // pred_region
          %264 = dma.done [#allocation6], 128
        $region52: #{tpu_custom_call.1} parent=39 // pred_fallthru
          _
        // Predicated region
        $region53: #{tpu_custom_call.1} parent=39 // pred_check
          %p265 = pneg %p108
        $region54: #{tpu_custom_call.1} parent=39 // pred_check_branch
          %267 = sbr.rel (%p265) target = $region56
        $region55: #{tpu_custom_call.1} parent=39 // pred_region
          %268 = dma.done [#allocation9], 8192
        $region56: #{tpu_custom_call.1} parent=39 // pred_fallthru
          _
        // Predicated region
        $region57: #{tpu_custom_call.1} parent=39 // pred_check
          %p269 = pneg %p129
        $region58: #{tpu_custom_call.1} parent=39 // pred_check_branch
          %271 = sbr.rel (%p269) target = $region60
        $region59: #{tpu_custom_call.1} parent=39 // pred_region
          %272 = dma.done [#allocation9], 8192
        $region60: #{tpu_custom_call.1} parent=39 // pred_fallthru
          _
        %s273 = sand.u32 %s32, 1
        %s274 = scalar_lea.sflag [#allocation3], %s273
        %s275 = sand.u32 %s32, 1
        %s276 = smul.addr %s275, 4
        %s277 = scalar_lea.vmem [#allocation2], %s276
        %p278 = pneg %p45
        %p279 = pneg %p42
        %p280 = pneg %p66
        %p281 = pneg %p63
        %p282 = pneg %p87
        %p283 = pneg %p84
        %p284 = pneg %p108
        %p285 = pneg %p105
        %p286 = pneg %p129
        %p287 = pneg %p126
        %p288 = pneg %p155
        %p289 = pneg %p152
        %s290 = sand.u32 %s142, 1
        %s291 = scalar_lea.sflag [#allocation4], %s290
        %s292 = sand.u32 %s142, 1
        %s293 = smul.addr %s292, 8
        %s294 = scalar_lea.vmem [#allocation11], %s293
        %v295 = vld [vmem:[%s252] sm:$0xf]
        %v296 = vld [vmem:[#allocation8] sm:$0xff]
        %v297 = vld [vmem:[#allocation8 + $0x8] sm:$0xff]
        %v298 = vld [vmem:[#allocation8 + $0x10] sm:$0xff]
        %v299 = vld [vmem:[#allocation8 + $0x18] sm:$0xff]
        %v300 = vld [vmem:[#allocation8 + $0x20] sm:$0xff]
        %v301 = vld [vmem:[#allocation8 + $0x28] sm:$0xff]
        %v302 = vld [vmem:[#allocation8 + $0x30] sm:$0xff]
        %v303 = vld [vmem:[#allocation8 + $0x38] sm:$0xff]
        %v304 = vld [vmem:[#allocation8 + $0x40] sm:$0xff]
        %v305 = vld [vmem:[#allocation8 + $0x48] sm:$0xff]
        %v306 = vld [vmem:[#allocation8 + $0x50] sm:$0xff]
        %v307 = vld [vmem:[#allocation8 + $0x58] sm:$0xff]
        %v308 = vld [vmem:[#allocation8 + $0x60] sm:$0xff]
        %v309 = vld [vmem:[#allocation8 + $0x68] sm:$0xff]
        %v310 = vld [vmem:[#allocation8 + $0x70] sm:$0xff]
        %v311 = vld [vmem:[#allocation8 + $0x78] sm:$0xff]
        %v312 = vld [vmem:[#allocation8 + $0x80] sm:$0xff]
        %v313 = vld [vmem:[#allocation8 + $0x88] sm:$0xff]
        %v314 = vld [vmem:[#allocation8 + $0x90] sm:$0xff]
        %v315 = vld [vmem:[#allocation8 + $0x98] sm:$0xff]
        %v316 = vld [vmem:[#allocation8 + $0xa0] sm:$0xff]
        %v317 = vld [vmem:[#allocation8 + $0xa8] sm:$0xff]
        %v318 = vld [vmem:[#allocation8 + $0xb0] sm:$0xff]
        %v319 = vld [vmem:[#allocation8 + $0xb8] sm:$0xff]
        %v320 = vld [vmem:[#allocation8 + $0xc0] sm:$0xff]
        %v321 = vld [vmem:[#allocation8 + $0xc8] sm:$0xff]
        %v322 = vld [vmem:[#allocation8 + $0xd0] sm:$0xff]
        %v323 = vld [vmem:[#allocation8 + $0xd8] sm:$0xff]
        %v324 = vld [vmem:[#allocation8 + $0xe0] sm:$0xff]
        %v325 = vld [vmem:[#allocation8 + $0xe8] sm:$0xff]
        %v326 = vld [vmem:[#allocation8 + $0xf0] sm:$0xff]
        %v327 = vld [vmem:[#allocation8 + $0xf8] sm:$0xff]
        %v328 = vld [vmem:[#allocation8 + $0x100] sm:$0xff]
        %v329 = vld [vmem:[#allocation8 + $0x108] sm:$0xff]
        %v330 = vld [vmem:[#allocation8 + $0x110] sm:$0xff]
        %v331 = vld [vmem:[#allocation8 + $0x118] sm:$0xff]
        %v332 = vld [vmem:[#allocation8 + $0x120] sm:$0xff]
        %v333 = vld [vmem:[#allocation8 + $0x128] sm:$0xff]
        %v334 = vld [vmem:[#allocation8 + $0x130] sm:$0xff]
        %v335 = vld [vmem:[#allocation8 + $0x138] sm:$0xff]
        %v336 = vld [vmem:[#allocation8 + $0x140] sm:$0xff]
        %v337 = vld [vmem:[#allocation8 + $0x148] sm:$0xff]
        %v338 = vld [vmem:[#allocation8 + $0x150] sm:$0xff]
        %v339 = vld [vmem:[#allocation8 + $0x158] sm:$0xff]
        %v340 = vld [vmem:[#allocation8 + $0x160] sm:$0xff]
        %v341 = vld [vmem:[#allocation8 + $0x168] sm:$0xff]
        %v342 = vld [vmem:[#allocation8 + $0x170] sm:$0xff]
        %v343 = vld [vmem:[#allocation8 + $0x178] sm:$0xff]
        %v344 = vld [vmem:[#allocation8 + $0x180] sm:$0xff]
        %v345 = vld [vmem:[#allocation8 + $0x188] sm:$0xff]
        %v346 = vld [vmem:[#allocation8 + $0x190] sm:$0xff]
        %v347 = vld [vmem:[#allocation8 + $0x198] sm:$0xff]
        %v348 = vld [vmem:[#allocation8 + $0x1a0] sm:$0xff]
        %v349 = vld [vmem:[#allocation8 + $0x1a8] sm:$0xff]
        %v350 = vld [vmem:[#allocation8 + $0x1b0] sm:$0xff]
        %v351 = vld [vmem:[#allocation8 + $0x1b8] sm:$0xff]
        %v352 = vld [vmem:[#allocation8 + $0x1c0] sm:$0xff]
        %v353 = vld [vmem:[#allocation8 + $0x1c8] sm:$0xff]
        %v354 = vld [vmem:[#allocation8 + $0x1d0] sm:$0xff]
        %v355 = vld [vmem:[#allocation8 + $0x1d8] sm:$0xff]
        %v356 = vld [vmem:[#allocation8 + $0x1e0] sm:$0xff]
        %v357 = vld [vmem:[#allocation8 + $0x1e8] sm:$0xff]
        %v358 = vld [vmem:[#allocation8 + $0x1f0] sm:$0xff]
        %v359 = vld [vmem:[#allocation8 + $0x1f8] sm:$0xff]
        %v362 = vunpack.c.l.s4 1983009808
        %v363 = vunpack.c.0.s8 %v362
        %v364 = vlaneseq
        %v365 = vshrl.u32 %v364, 7
        %v366 = vsub.s32 %v363, %v365
        %v367 = vrot.slane %v295, %v366
        %v368 = vcombine.high %v367, %v367
        %v435 = vunpack.c.l.b16 %v296
        %v436 = vunpack.c.h.b16 %v296
        %v437 = vunpack.c.l.b16 %v297
        %v438 = vunpack.c.h.b16 %v297
        %v439 = vunpack.c.l.b16 %v298
        %v440 = vunpack.c.h.b16 %v298
        %v441 = vunpack.c.l.b16 %v299
        %v442 = vunpack.c.h.b16 %v299
        %v443 = vunpack.c.l.b16 %v300
        %v444 = vunpack.c.h.b16 %v300
        %v445 = vunpack.c.l.b16 %v301
        %v446 = vunpack.c.h.b16 %v301
        %v447 = vunpack.c.l.b16 %v302
        %v448 = vunpack.c.h.b16 %v302
        %v449 = vunpack.c.l.b16 %v303
        %v450 = vunpack.c.h.b16 %v303
        %v451 = vunpack.c.l.b16 %v304
        %v452 = vunpack.c.h.b16 %v304
        %v453 = vunpack.c.l.b16 %v305
        %v454 = vunpack.c.h.b16 %v305
        %v455 = vunpack.c.l.b16 %v306
        %v456 = vunpack.c.h.b16 %v306
        %v457 = vunpack.c.l.b16 %v307
        %v458 = vunpack.c.h.b16 %v307
        %v459 = vunpack.c.l.b16 %v308
        %v460 = vunpack.c.h.b16 %v308
        %v461 = vunpack.c.l.b16 %v309
        %v462 = vunpack.c.h.b16 %v309
        %v463 = vunpack.c.l.b16 %v310
        %v464 = vunpack.c.h.b16 %v310
        %v465 = vunpack.c.l.b16 %v311
        %v466 = vunpack.c.h.b16 %v311
        %v467 = vunpack.c.l.b16 %v312
        %v468 = vunpack.c.h.b16 %v312
        %v469 = vunpack.c.l.b16 %v313
        %v470 = vunpack.c.h.b16 %v313
        %v471 = vunpack.c.l.b16 %v314
        %v472 = vunpack.c.h.b16 %v314
        %v473 = vunpack.c.l.b16 %v315
        %v474 = vunpack.c.h.b16 %v315
        %v475 = vunpack.c.l.b16 %v316
        %v476 = vunpack.c.h.b16 %v316
        %v477 = vunpack.c.l.b16 %v317
        %v478 = vunpack.c.h.b16 %v317
        %v479 = vunpack.c.l.b16 %v318
        %v480 = vunpack.c.h.b16 %v318
        %v481 = vunpack.c.l.b16 %v319
        %v482 = vunpack.c.h.b16 %v319
        %v483 = vunpack.c.l.b16 %v320
        %v484 = vunpack.c.h.b16 %v320
        %v485 = vunpack.c.l.b16 %v321
        %v486 = vunpack.c.h.b16 %v321
        %v487 = vunpack.c.l.b16 %v322
        %v488 = vunpack.c.h.b16 %v322
        %v489 = vunpack.c.l.b16 %v323
        %v490 = vunpack.c.h.b16 %v323
        %v491 = vunpack.c.l.b16 %v324
        %v492 = vunpack.c.h.b16 %v324
        %v493 = vunpack.c.l.b16 %v325
        %v494 = vunpack.c.h.b16 %v325
        %v495 = vunpack.c.l.b16 %v326
        %v496 = vunpack.c.h.b16 %v326
        %v497 = vunpack.c.l.b16 %v327
        %v498 = vunpack.c.h.b16 %v327
        %v499 = vunpack.c.l.b16 %v328
        %v500 = vunpack.c.h.b16 %v328
        %v501 = vunpack.c.l.b16 %v329
        %v502 = vunpack.c.h.b16 %v329
        %v503 = vunpack.c.l.b16 %v330
        %v504 = vunpack.c.h.b16 %v330
        %v505 = vunpack.c.l.b16 %v331
        %v506 = vunpack.c.h.b16 %v331
        %v507 = vunpack.c.l.b16 %v332
        %v508 = vunpack.c.h.b16 %v332
        %v509 = vunpack.c.l.b16 %v333
        %v510 = vunpack.c.h.b16 %v333
        %v511 = vunpack.c.l.b16 %v334
        %v512 = vunpack.c.h.b16 %v334
        %v513 = vunpack.c.l.b16 %v335
        %v514 = vunpack.c.h.b16 %v335
        %v515 = vunpack.c.l.b16 %v336
        %v516 = vunpack.c.h.b16 %v336
        %v517 = vunpack.c.l.b16 %v337
        %v518 = vunpack.c.h.b16 %v337
        %v519 = vunpack.c.l.b16 %v338
        %v520 = vunpack.c.h.b16 %v338
        %v521 = vunpack.c.l.b16 %v339
        %v522 = vunpack.c.h.b16 %v339
        %v523 = vunpack.c.l.b16 %v340
        %v524 = vunpack.c.h.b16 %v340
        %v525 = vunpack.c.l.b16 %v341
        %v526 = vunpack.c.h.b16 %v341
        %v527 = vunpack.c.l.b16 %v342
        %v528 = vunpack.c.h.b16 %v342
        %v529 = vunpack.c.l.b16 %v343
        %v530 = vunpack.c.h.b16 %v343
        %v531 = vunpack.c.l.b16 %v344
        %v532 = vunpack.c.h.b16 %v344
        %v533 = vunpack.c.l.b16 %v345
        %v534 = vunpack.c.h.b16 %v345
        %v535 = vunpack.c.l.b16 %v346
        %v536 = vunpack.c.h.b16 %v346
        %v537 = vunpack.c.l.b16 %v347
        %v538 = vunpack.c.h.b16 %v347
        %v539 = vunpack.c.l.b16 %v348
        %v540 = vunpack.c.h.b16 %v348
        %v541 = vunpack.c.l.b16 %v349
        %v542 = vunpack.c.h.b16 %v349
        %v543 = vunpack.c.l.b16 %v350
        %v544 = vunpack.c.h.b16 %v350
        %v545 = vunpack.c.l.b16 %v351
        %v546 = vunpack.c.h.b16 %v351
        %v547 = vunpack.c.l.b16 %v352
        %v548 = vunpack.c.h.b16 %v352
        %v549 = vunpack.c.l.b16 %v353
        %v550 = vunpack.c.h.b16 %v353
        %v551 = vunpack.c.l.b16 %v354
        %v552 = vunpack.c.h.b16 %v354
        %v553 = vunpack.c.l.b16 %v355
        %v554 = vunpack.c.h.b16 %v355
        %v555 = vunpack.c.l.b16 %v356
        %v556 = vunpack.c.h.b16 %v356
        %v557 = vunpack.c.l.b16 %v357
        %v558 = vunpack.c.h.b16 %v357
        %v559 = vunpack.c.l.b16 %v358
        %v560 = vunpack.c.h.b16 %v358
        %v561 = vunpack.c.l.b16 %v359
        %v562 = vunpack.c.h.b16 %v359
        %v563 = vpack.c.b16 %v439, %v435
        %v564 = vpack.c.b16 %v440, %v436
        %v565 = vpack.c.b16 %v441, %v437
        %v566 = vpack.c.b16 %v442, %v438
        %v567 = vpack.c.b16 %v447, %v443
        %v568 = vpack.c.b16 %v448, %v444
        %v569 = vpack.c.b16 %v449, %v445
        %v570 = vpack.c.b16 %v450, %v446
        %v571 = vpack.c.b16 %v455, %v451
        %v572 = vpack.c.b16 %v456, %v452
        %v573 = vpack.c.b16 %v457, %v453
        %v574 = vpack.c.b16 %v458, %v454
        %v575 = vpack.c.b16 %v463, %v459
        %v576 = vpack.c.b16 %v464, %v460
        %v577 = vpack.c.b16 %v465, %v461
        %v578 = vpack.c.b16 %v466, %v462
        %v579 = vpack.c.b16 %v471, %v467
        %v580 = vpack.c.b16 %v472, %v468
        %v581 = vpack.c.b16 %v473, %v469
        %v582 = vpack.c.b16 %v474, %v470
        %v583 = vpack.c.b16 %v479, %v475
        %v584 = vpack.c.b16 %v480, %v476
        %v585 = vpack.c.b16 %v481, %v477
        %v586 = vpack.c.b16 %v482, %v478
        %v587 = vpack.c.b16 %v487, %v483
        %v588 = vpack.c.b16 %v488, %v484
        %v589 = vpack.c.b16 %v489, %v485
        %v590 = vpack.c.b16 %v490, %v486
        %v591 = vpack.c.b16 %v495, %v491
        %v592 = vpack.c.b16 %v496, %v492
        %v593 = vpack.c.b16 %v497, %v493
        %v594 = vpack.c.b16 %v498, %v494
        %v595 = vpack.c.b16 %v503, %v499
        %v596 = vpack.c.b16 %v504, %v500
        %v597 = vpack.c.b16 %v505, %v501
        %v598 = vpack.c.b16 %v506, %v502
        %v599 = vpack.c.b16 %v511, %v507
        %v600 = vpack.c.b16 %v512, %v508
        %v601 = vpack.c.b16 %v513, %v509
        %v602 = vpack.c.b16 %v514, %v510
        %v603 = vpack.c.b16 %v519, %v515
        %v604 = vpack.c.b16 %v520, %v516
        %v605 = vpack.c.b16 %v521, %v517
        %v606 = vpack.c.b16 %v522, %v518
        %v607 = vpack.c.b16 %v527, %v523
        %v608 = vpack.c.b16 %v528, %v524
        %v609 = vpack.c.b16 %v529, %v525
        %v610 = vpack.c.b16 %v530, %v526
        %v611 = vpack.c.b16 %v535, %v531
        %v612 = vpack.c.b16 %v536, %v532
        %v613 = vpack.c.b16 %v537, %v533
        %v614 = vpack.c.b16 %v538, %v534
        %v615 = vpack.c.b16 %v543, %v539
        %v616 = vpack.c.b16 %v544, %v540
        %v617 = vpack.c.b16 %v545, %v541
        %v618 = vpack.c.b16 %v546, %v542
        %v619 = vpack.c.b16 %v551, %v547
        %v620 = vpack.c.b16 %v552, %v548
        %v621 = vpack.c.b16 %v553, %v549
        %v622 = vpack.c.b16 %v554, %v550
        %v623 = vpack.c.b16 %v559, %v555
        %v624 = vpack.c.b16 %v560, %v556
        %v625 = vpack.c.b16 %v561, %v557
        %v626 = vpack.c.b16 %v562, %v558
        %691 = vmatprep.subr.bf16.mxu0 %v564
        %692 = vmatpush1.bf16.msra.mxu0 %v563
        %693 = vmatprep.subr.bf16.mxu0 %v568
        %694 = vmatpush1.bf16.msra.mxu0 %v567
        %695 = vmatprep.subr.bf16.mxu0 %v572
        %696 = vmatpush1.bf16.msra.mxu0 %v571
        %697 = vmatprep.subr.bf16.mxu0 %v576
        %698 = vmatpush1.bf16.msra.mxu0 %v575
        %699 = vmatprep.subr.bf16.mxu0 %v580
        %700 = vmatpush1.bf16.msra.mxu0 %v579
        %701 = vmatprep.subr.bf16.mxu0 %v584
        %702 = vmatpush1.bf16.msra.mxu0 %v583
        %703 = vmatprep.subr.bf16.mxu0 %v588
        %704 = vmatpush1.bf16.msra.mxu0 %v587
        %705 = vmatprep.subr.bf16.mxu0 %v592
        %706 = vmatpush1.bf16.msra.mxu0 %v591
        %707 = vmatprep.subr.bf16.mxu0 %v596
        %708 = vmatpush1.bf16.msra.mxu0 %v595
        %709 = vmatprep.subr.bf16.mxu0 %v600
        %710 = vmatpush1.bf16.msra.mxu0 %v599
        %711 = vmatprep.subr.bf16.mxu0 %v604
        %712 = vmatpush1.bf16.msra.mxu0 %v603
        %713 = vmatprep.subr.bf16.mxu0 %v608
        %714 = vmatpush1.bf16.msra.mxu0 %v607
        %715 = vmatprep.subr.bf16.mxu0 %v612
        %716 = vmatpush1.bf16.msra.mxu0 %v611
        %717 = vmatprep.subr.bf16.mxu0 %v616
        %718 = vmatpush1.bf16.msra.mxu0 %v615
        %719 = vmatprep.subr.bf16.mxu0 %v620
        %720 = vmatpush1.bf16.msra.mxu0 %v619
        %721 = vmatprep.subr.bf16.mxu0 %v624
        %722 = vmatpush1.bf16.msra.mxu0 %v623
        %723 = vmatprep.mubr.bf16.mxu0 %v368
        %724 = vmatmul.mubr.bf16.gmra.mrb[0].mxu0 %v367
        %v725 = vpop.f32.mrb[0].mxu0
        %v726 = vadd.f32 0.0, %v725
        %v727 = vpop.f32.mrb[0].mxu0
        %v728 = vadd.f32 0.0, %v727
        %v729 = vpop.f32.mrb[0].mxu0
        %v730 = vpop.f32.mrb[0].mxu0
        %731 = vdwg.mxu0
        %732 = vmatprep.subr.bf16.mxu0 %v566
        %733 = vmatpush1.bf16.msra.mxu0 %v565
        %734 = vmatprep.subr.bf16.mxu0 %v570
        %735 = vmatpush1.bf16.msra.mxu0 %v569
        %736 = vmatprep.subr.bf16.mxu0 %v574
        %737 = vmatpush1.bf16.msra.mxu0 %v573
        %738 = vmatprep.subr.bf16.mxu0 %v578
        %739 = vmatpush1.bf16.msra.mxu0 %v577
        %740 = vmatprep.subr.bf16.mxu0 %v582
        %741 = vmatpush1.bf16.msra.mxu0 %v581
        %742 = vmatprep.subr.bf16.mxu0 %v586
        %743 = vmatpush1.bf16.msra.mxu0 %v585
        %744 = vmatprep.subr.bf16.mxu0 %v590
        %745 = vmatpush1.bf16.msra.mxu0 %v589
        %746 = vmatprep.subr.bf16.mxu0 %v594
        %747 = vmatpush1.bf16.msra.mxu0 %v593
        %748 = vmatprep.subr.bf16.mxu0 %v598
        %749 = vmatpush1.bf16.msra.mxu0 %v597
        %750 = vmatprep.subr.bf16.mxu0 %v602
        %751 = vmatpush1.bf16.msra.mxu0 %v601
        %752 = vmatprep.subr.bf16.mxu0 %v606
        %753 = vmatpush1.bf16.msra.mxu0 %v605
        %754 = vmatprep.subr.bf16.mxu0 %v610
        %755 = vmatpush1.bf16.msra.mxu0 %v609
        %756 = vmatprep.subr.bf16.mxu0 %v614
        %757 = vmatpush1.bf16.msra.mxu0 %v613
        %758 = vmatprep.subr.bf16.mxu0 %v618
        %759 = vmatpush1.bf16.msra.mxu0 %v617
        %760 = vmatprep.subr.bf16.mxu0 %v622
        %761 = vmatpush1.bf16.msra.mxu0 %v621
        %762 = vmatprep.subr.bf16.mxu0 %v626
        %763 = vmatpush1.bf16.msra.mxu0 %v625
        %764 = vmatprep.mubr.bf16.mxu0 %v368
        %765 = vmatmul.mubr.bf16.gmra.mrb[0].mxu0 %v367
        %v766 = vpop.f32.mrb[0].mxu0
        %v767 = vadd.f32 0.0, %v766
        %v768 = vpop.f32.mrb[0].mxu0
        %v769 = vadd.f32 0.0, %v768
        %v770 = vpop.f32.mrb[0].mxu0
        %v771 = vpop.f32.mrb[0].mxu0
        %772 = vdwg.mxu0
        %v773 = vld [vmem:[#allocation5] sm:$0xff]
        %v774 = vld [vmem:[#allocation7] sm:$0xff]
        %v776 = vcombine.high %v773, %v773
        %v778 = vmul.f32 %v726, %v773
        %v779 = vmul.f32 %v728, %v776
        %v781 = vcombine.high %v774, %v774
        %v783 = vmul.f32 %v767, %v774
        %v784 = vmul.f32 %v769, %v781
        %v785 = vsub.f32 %v778, %v783
        %v786 = vsub.f32 %v779, %v784
        %v787 = vmul.f32 %v726, %v774
        %v788 = vmul.f32 %v728, %v781
        %v789 = vmul.f32 %v767, %v773
        %v790 = vmul.f32 %v769, %v776
        %v791 = vadd.f32 %v787, %v789
        %v792 = vadd.f32 %v788, %v790
        %v793 = vpack.c.bf16 %v785, %v785
        %v794 = vpack.c.bf16 %v786, %v786
        %v795 = vpack.c.bf16 %v791, %v791
        %v796 = vpack.c.bf16 %v792, %v792
        %v797 = vld [vmem:[#allocation10] sm:$0xff]
        %v798 = vld [vmem:[#allocation10 + $0x8] sm:$0xff]
        %v799 = vld [vmem:[#allocation10 + $0x10] sm:$0xff]
        %v800 = vld [vmem:[#allocation10 + $0x18] sm:$0xff]
        %v801 = vld [vmem:[#allocation10 + $0x20] sm:$0xff]
        %v802 = vld [vmem:[#allocation10 + $0x28] sm:$0xff]
        %v803 = vld [vmem:[#allocation10 + $0x30] sm:$0xff]
        %v804 = vld [vmem:[#allocation10 + $0x38] sm:$0xff]
        %v805 = vld [vmem:[#allocation10 + $0x40] sm:$0xff]
        %v806 = vld [vmem:[#allocation10 + $0x48] sm:$0xff]
        %v807 = vld [vmem:[#allocation10 + $0x50] sm:$0xff]
        %v808 = vld [vmem:[#allocation10 + $0x58] sm:$0xff]
        %v809 = vld [vmem:[#allocation10 + $0x60] sm:$0xff]
        %v810 = vld [vmem:[#allocation10 + $0x68] sm:$0xff]
        %v811 = vld [vmem:[#allocation10 + $0x70] sm:$0xff]
        %v812 = vld [vmem:[#allocation10 + $0x78] sm:$0xff]
        %v813 = vld [vmem:[#allocation10 + $0x80] sm:$0xff]
        %v814 = vld [vmem:[#allocation10 + $0x88] sm:$0xff]
        %v815 = vld [vmem:[#allocation10 + $0x90] sm:$0xff]
        %v816 = vld [vmem:[#allocation10 + $0x98] sm:$0xff]
        %v817 = vld [vmem:[#allocation10 + $0xa0] sm:$0xff]
        %v818 = vld [vmem:[#allocation10 + $0xa8] sm:$0xff]
        %v819 = vld [vmem:[#allocation10 + $0xb0] sm:$0xff]
        %v820 = vld [vmem:[#allocation10 + $0xb8] sm:$0xff]
        %v821 = vld [vmem:[#allocation10 + $0xc0] sm:$0xff]
        %v822 = vld [vmem:[#allocation10 + $0xc8] sm:$0xff]
        %v823 = vld [vmem:[#allocation10 + $0xd0] sm:$0xff]
        %v824 = vld [vmem:[#allocation10 + $0xd8] sm:$0xff]
        %v825 = vld [vmem:[#allocation10 + $0xe0] sm:$0xff]
        %v826 = vld [vmem:[#allocation10 + $0xe8] sm:$0xff]
        %v827 = vld [vmem:[#allocation10 + $0xf0] sm:$0xff]
        %v828 = vld [vmem:[#allocation10 + $0xf8] sm:$0xff]
        %v829 = vld [vmem:[#allocation10 + $0x100] sm:$0xff]
        %v830 = vld [vmem:[#allocation10 + $0x108] sm:$0xff]
        %v831 = vld [vmem:[#allocation10 + $0x110] sm:$0xff]
        %v832 = vld [vmem:[#allocation10 + $0x118] sm:$0xff]
        %v833 = vld [vmem:[#allocation10 + $0x120] sm:$0xff]
        %v834 = vld [vmem:[#allocation10 + $0x128] sm:$0xff]
        %v835 = vld [vmem:[#allocation10 + $0x130] sm:$0xff]
        %v836 = vld [vmem:[#allocation10 + $0x138] sm:$0xff]
        %v837 = vld [vmem:[#allocation10 + $0x140] sm:$0xff]
        %v838 = vld [vmem:[#allocation10 + $0x148] sm:$0xff]
        %v839 = vld [vmem:[#allocation10 + $0x150] sm:$0xff]
        %v840 = vld [vmem:[#allocation10 + $0x158] sm:$0xff]
        %v841 = vld [vmem:[#allocation10 + $0x160] sm:$0xff]
        %v842 = vld [vmem:[#allocation10 + $0x168] sm:$0xff]
        %v843 = vld [vmem:[#allocation10 + $0x170] sm:$0xff]
        %v844 = vld [vmem:[#allocation10 + $0x178] sm:$0xff]
        %v845 = vld [vmem:[#allocation10 + $0x180] sm:$0xff]
        %v846 = vld [vmem:[#allocation10 + $0x188] sm:$0xff]
        %v847 = vld [vmem:[#allocation10 + $0x190] sm:$0xff]
        %v848 = vld [vmem:[#allocation10 + $0x198] sm:$0xff]
        %v849 = vld [vmem:[#allocation10 + $0x1a0] sm:$0xff]
        %v850 = vld [vmem:[#allocation10 + $0x1a8] sm:$0xff]
        %v851 = vld [vmem:[#allocation10 + $0x1b0] sm:$0xff]
        %v852 = vld [vmem:[#allocation10 + $0x1b8] sm:$0xff]
        %v853 = vld [vmem:[#allocation10 + $0x1c0] sm:$0xff]
        %v854 = vld [vmem:[#allocation10 + $0x1c8] sm:$0xff]
        %v855 = vld [vmem:[#allocation10 + $0x1d0] sm:$0xff]
        %v856 = vld [vmem:[#allocation10 + $0x1d8] sm:$0xff]
        %v857 = vld [vmem:[#allocation10 + $0x1e0] sm:$0xff]
        %v858 = vld [vmem:[#allocation10 + $0x1e8] sm:$0xff]
        %v859 = vld [vmem:[#allocation10 + $0x1f0] sm:$0xff]
        %v860 = vld [vmem:[#allocation10 + $0x1f8] sm:$0xff]
        %v925 = vunpack.c.l.b16 %v797
        %v926 = vunpack.c.h.b16 %v797
        %v927 = vunpack.c.l.b16 %v798
        %v928 = vunpack.c.h.b16 %v798
        %v929 = vunpack.c.l.b16 %v799
        %v930 = vunpack.c.h.b16 %v799
        %v931 = vunpack.c.l.b16 %v800
        %v932 = vunpack.c.h.b16 %v800
        %v933 = vunpack.c.l.b16 %v801
        %v934 = vunpack.c.h.b16 %v801
        %v935 = vunpack.c.l.b16 %v802
        %v936 = vunpack.c.h.b16 %v802
        %v937 = vunpack.c.l.b16 %v803
        %v938 = vunpack.c.h.b16 %v803
        %v939 = vunpack.c.l.b16 %v804
        %v940 = vunpack.c.h.b16 %v804
        %v941 = vunpack.c.l.b16 %v805
        %v942 = vunpack.c.h.b16 %v805
        %v943 = vunpack.c.l.b16 %v806
        %v944 = vunpack.c.h.b16 %v806
        %v945 = vunpack.c.l.b16 %v807
        %v946 = vunpack.c.h.b16 %v807
        %v947 = vunpack.c.l.b16 %v808
        %v948 = vunpack.c.h.b16 %v808
        %v949 = vunpack.c.l.b16 %v809
        %v950 = vunpack.c.h.b16 %v809
        %v951 = vunpack.c.l.b16 %v810
        %v952 = vunpack.c.h.b16 %v810
        %v953 = vunpack.c.l.b16 %v811
        %v954 = vunpack.c.h.b16 %v811
        %v955 = vunpack.c.l.b16 %v812
        %v956 = vunpack.c.h.b16 %v812
        %v957 = vunpack.c.l.b16 %v813
        %v958 = vunpack.c.h.b16 %v813
        %v959 = vunpack.c.l.b16 %v814
        %v960 = vunpack.c.h.b16 %v814
        %v961 = vunpack.c.l.b16 %v815
        %v962 = vunpack.c.h.b16 %v815
        %v963 = vunpack.c.l.b16 %v816
        %v964 = vunpack.c.h.b16 %v816
        %v965 = vunpack.c.l.b16 %v817
        %v966 = vunpack.c.h.b16 %v817
        %v967 = vunpack.c.l.b16 %v818
        %v968 = vunpack.c.h.b16 %v818
        %v969 = vunpack.c.l.b16 %v819
        %v970 = vunpack.c.h.b16 %v819
        %v971 = vunpack.c.l.b16 %v820
        %v972 = vunpack.c.h.b16 %v820
        %v973 = vunpack.c.l.b16 %v821
        %v974 = vunpack.c.h.b16 %v821
        %v975 = vunpack.c.l.b16 %v822
        %v976 = vunpack.c.h.b16 %v822
        %v977 = vunpack.c.l.b16 %v823
        %v978 = vunpack.c.h.b16 %v823
        %v979 = vunpack.c.l.b16 %v824
        %v980 = vunpack.c.h.b16 %v824
        %v981 = vunpack.c.l.b16 %v825
        %v982 = vunpack.c.h.b16 %v825
        %v983 = vunpack.c.l.b16 %v826
        %v984 = vunpack.c.h.b16 %v826
        %v985 = vunpack.c.l.b16 %v827
        %v986 = vunpack.c.h.b16 %v827
        %v987 = vunpack.c.l.b16 %v828
        %v988 = vunpack.c.h.b16 %v828
        %v989 = vunpack.c.l.b16 %v829
        %v990 = vunpack.c.h.b16 %v829
        %v991 = vunpack.c.l.b16 %v830
        %v992 = vunpack.c.h.b16 %v830
        %v993 = vunpack.c.l.b16 %v831
        %v994 = vunpack.c.h.b16 %v831
        %v995 = vunpack.c.l.b16 %v832
        %v996 = vunpack.c.h.b16 %v832
        %v997 = vunpack.c.l.b16 %v833
        %v998 = vunpack.c.h.b16 %v833
        %v999 = vunpack.c.l.b16 %v834
        %v1000 = vunpack.c.h.b16 %v834
        %v1001 = vunpack.c.l.b16 %v835
        %v1002 = vunpack.c.h.b16 %v835
        %v1003 = vunpack.c.l.b16 %v836
        %v1004 = vunpack.c.h.b16 %v836
        %v1005 = vunpack.c.l.b16 %v837
        %v1006 = vunpack.c.h.b16 %v837
        %v1007 = vunpack.c.l.b16 %v838
        %v1008 = vunpack.c.h.b16 %v838
        %v1009 = vunpack.c.l.b16 %v839
        %v1010 = vunpack.c.h.b16 %v839
        %v1011 = vunpack.c.l.b16 %v840
        %v1012 = vunpack.c.h.b16 %v840
        %v1013 = vunpack.c.l.b16 %v841
        %v1014 = vunpack.c.h.b16 %v841
        %v1015 = vunpack.c.l.b16 %v842
        %v1016 = vunpack.c.h.b16 %v842
        %v1017 = vunpack.c.l.b16 %v843
        %v1018 = vunpack.c.h.b16 %v843
        %v1019 = vunpack.c.l.b16 %v844
        %v1020 = vunpack.c.h.b16 %v844
        %v1021 = vunpack.c.l.b16 %v845
        %v1022 = vunpack.c.h.b16 %v845
        %v1023 = vunpack.c.l.b16 %v846
        %v1024 = vunpack.c.h.b16 %v846
        %v1025 = vunpack.c.l.b16 %v847
        %v1026 = vunpack.c.h.b16 %v847
        %v1027 = vunpack.c.l.b16 %v848
        %v1028 = vunpack.c.h.b16 %v848
        %v1029 = vunpack.c.l.b16 %v849
        %v1030 = vunpack.c.h.b16 %v849
        %v1031 = vunpack.c.l.b16 %v850
        %v1032 = vunpack.c.h.b16 %v850
        %v1033 = vunpack.c.l.b16 %v851
        %v1034 = vunpack.c.h.b16 %v851
        %v1035 = vunpack.c.l.b16 %v852
        %v1036 = vunpack.c.h.b16 %v852
        %v1037 = vunpack.c.l.b16 %v853
        %v1038 = vunpack.c.h.b16 %v853
        %v1039 = vunpack.c.l.b16 %v854
        %v1040 = vunpack.c.h.b16 %v854
        %v1041 = vunpack.c.l.b16 %v855
        %v1042 = vunpack.c.h.b16 %v855
        %v1043 = vunpack.c.l.b16 %v856
        %v1044 = vunpack.c.h.b16 %v856
        %v1045 = vunpack.c.l.b16 %v857
        %v1046 = vunpack.c.h.b16 %v857
        %v1047 = vunpack.c.l.b16 %v858
        %v1048 = vunpack.c.h.b16 %v858
        %v1049 = vunpack.c.l.b16 %v859
        %v1050 = vunpack.c.h.b16 %v859
        %v1051 = vunpack.c.l.b16 %v860
        %v1052 = vunpack.c.h.b16 %v860
        %v1053 = vpack.c.b16 %v927, %v925
        %v1054 = vpack.c.b16 %v928, %v926
        %v1055 = vpack.c.b16 %v931, %v929
        %v1056 = vpack.c.b16 %v932, %v930
        %v1057 = vpack.c.b16 %v935, %v933
        %v1058 = vpack.c.b16 %v936, %v934
        %v1059 = vpack.c.b16 %v939, %v937
        %v1060 = vpack.c.b16 %v940, %v938
        %v1061 = vpack.c.b16 %v943, %v941
        %v1062 = vpack.c.b16 %v944, %v942
        %v1063 = vpack.c.b16 %v947, %v945
        %v1064 = vpack.c.b16 %v948, %v946
        %v1065 = vpack.c.b16 %v951, %v949
        %v1066 = vpack.c.b16 %v952, %v950
        %v1067 = vpack.c.b16 %v955, %v953
        %v1068 = vpack.c.b16 %v956, %v954
        %v1069 = vpack.c.b16 %v959, %v957
        %v1070 = vpack.c.b16 %v960, %v958
        %v1071 = vpack.c.b16 %v963, %v961
        %v1072 = vpack.c.b16 %v964, %v962
        %v1073 = vpack.c.b16 %v967, %v965
        %v1074 = vpack.c.b16 %v968, %v966
        %v1075 = vpack.c.b16 %v971, %v969
        %v1076 = vpack.c.b16 %v972, %v970
        %v1077 = vpack.c.b16 %v975, %v973
        %v1078 = vpack.c.b16 %v976, %v974
        %v1079 = vpack.c.b16 %v979, %v977
        %v1080 = vpack.c.b16 %v980, %v978
        %v1081 = vpack.c.b16 %v983, %v981
        %v1082 = vpack.c.b16 %v984, %v982
        %v1083 = vpack.c.b16 %v987, %v985
        %v1084 = vpack.c.b16 %v988, %v986
        %v1085 = vpack.c.b16 %v991, %v989
        %v1086 = vpack.c.b16 %v992, %v990
        %v1087 = vpack.c.b16 %v995, %v993
        %v1088 = vpack.c.b16 %v996, %v994
        %v1089 = vpack.c.b16 %v999, %v997
        %v1090 = vpack.c.b16 %v1000, %v998
        %v1091 = vpack.c.b16 %v1003, %v1001
        %v1092 = vpack.c.b16 %v1004, %v1002
        %v1093 = vpack.c.b16 %v1007, %v1005
        %v1094 = vpack.c.b16 %v1008, %v1006
        %v1095 = vpack.c.b16 %v1011, %v1009
        %v1096 = vpack.c.b16 %v1012, %v1010
        %v1097 = vpack.c.b16 %v1015, %v1013
        %v1098 = vpack.c.b16 %v1016, %v1014
        %v1099 = vpack.c.b16 %v1019, %v1017
        %v1100 = vpack.c.b16 %v1020, %v1018
        %v1101 = vpack.c.b16 %v1023, %v1021
        %v1102 = vpack.c.b16 %v1024, %v1022
        %v1103 = vpack.c.b16 %v1027, %v1025
        %v1104 = vpack.c.b16 %v1028, %v1026
        %v1105 = vpack.c.b16 %v1031, %v1029
        %v1106 = vpack.c.b16 %v1032, %v1030
        %v1107 = vpack.c.b16 %v1035, %v1033
        %v1108 = vpack.c.b16 %v1036, %v1034
        %v1109 = vpack.c.b16 %v1039, %v1037
        %v1110 = vpack.c.b16 %v1040, %v1038
        %v1111 = vpack.c.b16 %v1043, %v1041
        %v1112 = vpack.c.b16 %v1044, %v1042
        %v1113 = vpack.c.b16 %v1047, %v1045
        %v1114 = vpack.c.b16 %v1048, %v1046
        %v1115 = vpack.c.b16 %v1051, %v1049
        %v1116 = vpack.c.b16 %v1052, %v1050
        %1181 = vmatprep.subr.bf16.mxu0 %v1054
        %1182 = vmatpush1.bf16.msra.mxu0 %v1053
        %1183 = vmatprep.subr.bf16.mxu0 %v1056
        %1184 = vmatpush1.bf16.msra.mxu0 %v1055
        %1185 = vmatprep.subr.bf16.mxu0 %v1058
        %1186 = vmatpush1.bf16.msra.mxu0 %v1057
        %1187 = vmatprep.subr.bf16.mxu0 %v1060
        %1188 = vmatpush1.bf16.msra.mxu0 %v1059
        %1189 = vmatprep.subr.bf16.mxu0 %v1062
        %1190 = vmatpush1.bf16.msra.mxu0 %v1061
        %1191 = vmatprep.subr.bf16.mxu0 %v1064
        %1192 = vmatpush1.bf16.msra.mxu0 %v1063
        %1193 = vmatprep.subr.bf16.mxu0 %v1066
        %1194 = vmatpush1.bf16.msra.mxu0 %v1065
        %1195 = vmatprep.subr.bf16.mxu0 %v1068
        %1196 = vmatpush1.bf16.msra.mxu0 %v1067
        %1197 = vmatprep.subr.bf16.mxu0 %v1070
        %1198 = vmatpush1.bf16.msra.mxu0 %v1069
        %1199 = vmatprep.subr.bf16.mxu0 %v1072
        %1200 = vmatpush1.bf16.msra.mxu0 %v1071
        %1201 = vmatprep.subr.bf16.mxu0 %v1074
        %1202 = vmatpush1.bf16.msra.mxu0 %v1073
        %1203 = vmatprep.subr.bf16.mxu0 %v1076
        %1204 = vmatpush1.bf16.msra.mxu0 %v1075
        %1205 = vmatprep.subr.bf16.mxu0 %v1078
        %1206 = vmatpush1.bf16.msra.mxu0 %v1077
        %1207 = vmatprep.subr.bf16.mxu0 %v1080
        %1208 = vmatpush1.bf16.msra.mxu0 %v1079
        %1209 = vmatprep.subr.bf16.mxu0 %v1082
        %1210 = vmatpush1.bf16.msra.mxu0 %v1081
        %1211 = vmatprep.subr.bf16.mxu0 %v1084
        %1212 = vmatpush1.bf16.msra.mxu0 %v1083
        %1213 = vmatprep.mubr.bf16.mxu0 %v794
        %1214 = vmatmul.mubr.bf16.gmra.mrb[0].mxu0 %v793
        %v1215 = vpop.f32.mrb[0].mxu0
        %v1216 = vadd.f32 0.0, %v1215
        %v1217 = vpop.f32.mrb[0].mxu0
        %v1218 = vadd.f32 0.0, %v1217
        %v1219 = vpop.f32.mrb[0].mxu0
        %v1220 = vpop.f32.mrb[0].mxu0
        %1221 = vdwg.mxu0
        %1222 = vmatprep.subr.bf16.mxu0 %v1086
        %1223 = vmatpush1.bf16.msra.mxu0 %v1085
        %1224 = vmatprep.subr.bf16.mxu0 %v1088
        %1225 = vmatpush1.bf16.msra.mxu0 %v1087
        %1226 = vmatprep.subr.bf16.mxu0 %v1090
        %1227 = vmatpush1.bf16.msra.mxu0 %v1089
        %1228 = vmatprep.subr.bf16.mxu0 %v1092
        %1229 = vmatpush1.bf16.msra.mxu0 %v1091
        %1230 = vmatprep.subr.bf16.mxu0 %v1094
        %1231 = vmatpush1.bf16.msra.mxu0 %v1093
        %1232 = vmatprep.subr.bf16.mxu0 %v1096
        %1233 = vmatpush1.bf16.msra.mxu0 %v1095
        %1234 = vmatprep.subr.bf16.mxu0 %v1098
        %1235 = vmatpush1.bf16.msra.mxu0 %v1097
        %1236 = vmatprep.subr.bf16.mxu0 %v1100
        %1237 = vmatpush1.bf16.msra.mxu0 %v1099
        %1238 = vmatprep.subr.bf16.mxu0 %v1102
        %1239 = vmatpush1.bf16.msra.mxu0 %v1101
        %1240 = vmatprep.subr.bf16.mxu0 %v1104
        %1241 = vmatpush1.bf16.msra.mxu0 %v1103
        %1242 = vmatprep.subr.bf16.mxu0 %v1106
        %1243 = vmatpush1.bf16.msra.mxu0 %v1105
        %1244 = vmatprep.subr.bf16.mxu0 %v1108
        %1245 = vmatpush1.bf16.msra.mxu0 %v1107
        %1246 = vmatprep.subr.bf16.mxu0 %v1110
        %1247 = vmatpush1.bf16.msra.mxu0 %v1109
        %1248 = vmatprep.subr.bf16.mxu0 %v1112
        %1249 = vmatpush1.bf16.msra.mxu0 %v1111
        %1250 = vmatprep.subr.bf16.mxu0 %v1114
        %1251 = vmatpush1.bf16.msra.mxu0 %v1113
        %1252 = vmatprep.subr.bf16.mxu0 %v1116
        %1253 = vmatpush1.bf16.msra.mxu0 %v1115
        %1254 = vmatprep.mubr.bf16.mxu0 %v796
        %1255 = vmatmul.mubr.bf16.gmra.mrb[0].mxu0 %v795
        %v1256 = vpop.f32.mrb[0].mxu0
        %v1257 = vadd.f32 %v1216, %v1256
        %v1258 = vpop.f32.mrb[0].mxu0
        %v1259 = vadd.f32 %v1218, %v1258
        %v1260 = vpop.f32.mrb[0].mxu0
        %v1261 = vpop.f32.mrb[0].mxu0
        %1262 = vdwg.mxu0
        %v1265 = vcombine.low %v1257, %v1259
        %1267 = vst [vmem:[%s294] sm:$0xff] %v1265
        %s1268 = sand.u32 %s142, 1
        %s1269 = scalar_lea.sflag [#allocation4], %s1268
        %s1270 = sand.u32 %s142, 1
        %s1271 = smul.addr %s1270, 8
        %s1272 = scalar_lea.vmem [#allocation11], %s1271
        // Predicated region
        $region61: #{tpu_custom_call.1} parent=39 // pred_check
          %p1273 = pneg %p152
        $region62: #{tpu_custom_call.1} parent=39 // pred_check_branch
          %1275 = sbr.rel (%p1273) target = $region64
        $region63: #{tpu_custom_call.1} parent=39 // pred_region
          %s1277 = ssub.s32 128, 128
          %1278 = vsyncadd %s1269, %s1277
          %s1279 = smul.addr %s24, 2
          %s1280 = smul.addr %s1279, 64
          %s1281 = scalar_lea.hbm %s5, %s1280
          %s1283 = sshll.u32 %s1272, 4
          %s1284 = int_to_ptr.vmem [resolvable:$true] %s1283
          %1286 = dma.vmem_to_hbm [thread:$0]  %s1284, 128, %s1281, %s1269
        $region64: #{tpu_custom_call.1} parent=39 // pred_fallthru
          _
      $region40: #{tpu_custom_call.1} parent=5 // pred_fallthru
        _
      %p1287 = scmp.le.s32.totalorder 2, %s19
      // Predicated region
      $region65: #{tpu_custom_call.1} parent=5 // pred_check
        %p1288 = pneg %p1287
      $region66: #{tpu_custom_call.1} parent=5 // pred_check_branch
        %1290 = sbr.rel (%p1288) target = $region68
      $region67: #{tpu_custom_call.1} parent=5 // pred_region
        %s1291 = ssub.s32 %s19, 2
        // Predicated region
        $region69: #{tpu_custom_call.1} parent=67 // pred_check
          %p1292 = pneg %p158
        $region70: #{tpu_custom_call.1} parent=67 // pred_check_branch
          %1294 = sbr.rel (%p1292) target = $region72
        $region71: #{tpu_custom_call.1} parent=67 // pred_region
          %s1295 = sand.u32 %s143, 1
          %s1296 = scalar_lea.sflag [#allocation4], %s1295
          %s1297 = sand.u32 %s143, 1
          %s1298 = smul.addr %s1297, 8
          %s1299 = scalar_lea.vmem [#allocation11], %s1298
          %1300 = dma.done %s1296, 128
        $region72: #{tpu_custom_call.1} parent=67 // pred_fallthru
          _
      $region68: #{tpu_custom_call.1} parent=5 // pred_fallthru
        _
    $region6: #{tpu_custom_call.1} parent=1 // loop_footer
      %s23 = sadd.s32 1, %s19
    $region7: #{tpu_custom_call.1} parent=1 // loop_footer_branch
      %18 = sbr.rel target = $region3
    $region8: #{tpu_custom_call.1} parent=1 // loop_exit
      _
    %1301 = vsyncpa [#allocation3], 1
    %s1302 = scalar_lea.sflag [#allocation3], 1
    %1303 = vsyncpa %s1302, 1
    %1304 = vsyncpa [#allocation6], 1
    %1305 = vsyncpa [#allocation9], 1
    %1306 = vsyncpa [#allocation4], 1
    %s1307 = scalar_lea.sflag [#allocation4], 1
    %1308 = vsyncpa %s1307, 1

</llo_original>
